<compile_context>
chip_gen: v7x
topology: tpu7x:2x2x1
jax: 0.10.0
libtpu: 0.0.40
codegen_flags: <defaults>
</compile_context>

<pallas_src>
import functools

import jax
import jax.numpy as jnp
from jax import lax
from jax.experimental import pallas as pl
from jax.experimental.pallas import tpu as pltpu


def _gap_kernel(x_ref, o_ref, acc_ref, *, start, n_total, k0, tn, nk, inv_len,
                mask_first, mask_last):
    """Accumulate the sum of one (bt, tn, ct) sequence tile into acc_ref."""
    k = pl.program_id(2)                                   # reduction tile index

    @pl.when(k == 0)
    def _init():
        acc_ref[...] = jnp.zeros_like(acc_ref)

    def _plain_sum():
        # Upcast is fused into the reduce: no (bt, tn, ct) f32 temporary.
        acc_ref[...] += jnp.sum(x_ref[...], axis=1, dtype=jnp.float32)

    if mask_first or mask_last:
        conds = []
        if mask_first:
            conds.append(k == 0)
        if mask_last:
            conds.append(k == nk - 1)
        is_boundary = functools.reduce(jnp.logical_or, conds)

        @pl.when(is_boundary)
        def _masked_sum():
            # Global row index along N of each row in this tile; zero out the
            # ragged head (< window start) and the tail overhang (>= N, rows
            # padded by the OOB block read).  (1, tn, 1) iota broadcasts over
            # batch and channel lanes.
            row = (k0 + k) * tn + lax.broadcasted_iota(jnp.int32, (1, tn, 1), 1)
            keep = (row >= start) & (row < n_total)
            x = jnp.where(keep, x_ref[...], 0)
            acc_ref[...] += jnp.sum(x, axis=1, dtype=jnp.float32)

        @pl.when(jnp.logical_not(is_boundary))
        def _interior_sum():
            _plain_sum()
    else:
        _plain_sum()

    @pl.when(k == nk - 1)
    def _finalize():
        o_ref[...] = (acc_ref[...] * inv_len).astype(o_ref.dtype)


def _sublane_pack(dtype) -> int:
    # Packed sublane rows: f32 -> 8, bf16 -> 16, int8/fp8 -> 32.
    return max(8, 32 // jnp.dtype(dtype).itemsize)


def _vmem_capacity_bytes() -> int:
    try:
        return int(pltpu.get_tpu_info().vmem_capacity_bytes)
    except Exception:
        return 64 << 20                                    # conservative (v7x per-TC)


def _align_up(v: int, m: int) -> int:
    return -(-v // m) * m


def _choose_tn(n_total, start, pool_len, pack, tn_max, overhead_rows):
    """Pick the N-tile minimizing DMA'd rows + fixed per-grid-step overhead."""
    tn_max = max(pack, (tn_max // pack) * pack)

    cands = set()

    def add(t):
        t = min(_align_up(max(1, t), pack), tn_max)
        cands.add(n_total if t >= n_total else t)          # full-dim block is legal

    add(tn_max)
    add(n_total)
    for d in (1, 2, 4, 8):                                 # bound head over-read
        add(pl.cdiv(pool_len, d))

    best = None
    for tn in cands:
        k0 = start // tn
        nk = pl.cdiv(n_total - k0 * tn, tn)
        cost = nk * tn + nk * overhead_rows                # HBM rows + step overhead
        if best is None or cost < best[0]:
            best = (cost, tn, k0, nk)
    return best[1], best[2], best[3]


def global_average_pool_pallas(x: jax.Array, pool_len: int, *,
                               batch_tile: int | None = None,
                               n_tile: int | None = None) -> jax.Array:
    """Mean over the trailing `pool_len` tokens of (B, N, C) -> (B, C)."""
    B, N, C = x.shape
    assert N >= pool_len, "input length must be >= pool_len"
    assert pool_len > 0, "pool_len must be positive"

    start = N - pool_len                                   # static trailing offset
    itemsize = jnp.dtype(x.dtype).itemsize
    pack = _sublane_pack(x.dtype)

    # Batch tile: one packed sublane group (dense, unmasked output stores).
    bt = min(B, batch_tile if batch_tile is not None else pack)

    # Per-generation VMEM budget: one input buffer <= ~8 MiB so the
    # double-buffered pipeline plus output/scratch fits scoped VMEM on
    # v5e / v6e / v7x (vmem_limit_bytes is set explicitly below).
    cap = _vmem_capacity_bytes()
    per_buf = min(8 << 20, max(1 << 20, cap // 8))

    # C chunking: (a) give v7x's second TensorCore a parallel block when the
    # batch axis has only one block, (b) keep huge-C tiles inside the budget.
    ct = C
    if pl.cdiv(B, bt) < 2 and C >= 256 and C % 256 == 0:
        ct = C // 2
    while bt * pack * ct * itemsize > per_buf and ct % 256 == 0:
        ct //= 2
    nc = C // ct

    # Sequence tile.
    row_bytes = bt * ct * itemsize
    overhead_rows = max(1, 350_000 // row_bytes)           # ~0.35us step @ ~1 TB/s
    tn_max = max(1, per_buf // row_bytes)
    if n_tile is not None:
        tn = N if n_tile >= N else max(pack, (min(n_tile, tn_max) // pack) * pack)
        k0 = start // tn
        nk = pl.cdiv(N - k0 * tn, tn)
    else:
        tn, k0, nk = _choose_tn(N, start, pool_len, pack, tn_max, overhead_rows)

    mask_first = (start % tn) != 0                         # ragged head in first tile
    mask_last = ((N - k0 * tn) % tn) != 0                  # OOB overhang in last tile

    kernel = functools.partial(
        _gap_kernel, start=start, n_total=N, k0=k0, tn=tn, nk=nk,
        inv_len=1.0 / float(pool_len), mask_first=mask_first, mask_last=mask_last)

    in_tile_bytes = bt * tn * ct * itemsize
    out_tile_bytes = bt * ct * itemsize
    acc_bytes = bt * ct * 4
    needed = 2 * in_tile_bytes + 2 * out_tile_bytes + acc_bytes + (2 << 20)
    vmem_limit = int(min(cap * 3 // 4, max(32 << 20, needed)))

    cost = pl.CostEstimate(
        flops=B * pool_len * C,
        transcendentals=0,
        bytes_accessed=B * pool_len * C * itemsize + B * C * itemsize)

    return pl.pallas_call(
        kernel,
        out_shape=jax.ShapeDtypeStruct((B, C), x.dtype),
        grid_spec=pltpu.PrefetchScalarGridSpec(
            num_scalar_prefetch=0,
            grid=(pl.cdiv(B, bt), nc, nk),                 # B, C parallel; N reduction last
            in_specs=[pl.BlockSpec((bt, tn, ct), lambda b, c, k: (b, k0 + k, c))],
            out_specs=pl.BlockSpec((bt, ct), lambda b, c, k: (b, c)),
            scratch_shapes=[pltpu.VMEM((bt, ct), jnp.float32)]),
        compiler_params=pltpu.CompilerParams(
            dimension_semantics=("parallel", "parallel", "arbitrary"),
            vmem_limit_bytes=vmem_limit),
        cost_estimate=cost,
    )(x)


def global_average_pool(x: jax.Array, pool_len: int, *,
                        force_pallas: bool = False) -> jax.Array:
    """GlobalAveragePool forward: (B, N, C) -> (B, C)."""
    B, N, C = x.shape
    assert N >= pool_len, "input length must be >= pool_len"
    assert pool_len > 0, "pool_len must be positive"
    pooled_bytes = B * pool_len * C * jnp.dtype(x.dtype).itemsize
    # Small problems: XLA's fused slice+reduce beats per-call / per-step
    # overhead (break-even is higher on v7x's 3.2 TB/s HBM, hence ~1 MiB).
    if not force_pallas and (C < 128 or pooled_bytes < (1 << 20)):
        return jnp.mean(x[:, N - pool_len:, :], axis=1).astype(x.dtype)
    return global_average_pool_pallas(x, pool_len)


if __name__ == "__main__":
    key = jax.random.PRNGKey(0)
    k1, k2, k3 = jax.random.split(key, 3)

    # --- Test 1: small module-like shape, forced through the Pallas path. ----
    B, N, C = 2, 8, 32
    pool_len = 6                                           # trailing window
    x = jax.random.normal(k1, (B, N, C), dtype=jnp.float32)
    out = jax.block_until_ready(global_average_pool_pallas(x, pool_len))
    ref = jnp.mean(x[:, N - pool_len:, :], axis=1)
    assert out.shape == (B, C), out.shape
    assert jnp.allclose(out, ref, atol=1e-5, rtol=1e-5), "mismatch vs reference (1)"

    # --- Test 2: ragged head + tail overhang with interior (unmasked) tiles. -
    B2, N2, C2, pool2 = 5, 40, 128, 35
    x2 = jax.random.normal(k2, (B2, N2, C2), dtype=jnp.float32)
    out2 = jax.block_until_ready(global_average_pool_pallas(x2, pool2, n_tile=16))
    ref2 = jnp.mean(x2[:, N2 - pool2:, :], axis=1)
    assert out2.shape == (B2, C2), out2.shape
    assert jnp.allclose(out2, ref2, atol=1e-5, rtol=1e-5), "mismatch vs reference (2)"

    # --- Test 3: bf16 input, C chunked into two parallel channel blocks. -----
    B3, N3, C3, pool3 = 4, 64, 256, 50
    x3 = jax.random.normal(k3, (B3, N3, C3), dtype=jnp.bfloat16)
    out3 = jax.block_until_ready(global_average_pool_pallas(x3, pool3))
    ref3 = jnp.mean(x3.astype(jnp.float32)[:, N3 - pool3:, :], axis=1)
    assert out3.shape == (B3, C3), out3.shape
    assert jnp.allclose(out3.astype(jnp.float32), ref3, atol=2e-2, rtol=2e-2), \
        "mismatch vs reference (3)"

    # --- Test 4: tiny-shape dispatch (pure-JAX fallback path). ---------------
    out4 = jax.block_until_ready(global_average_pool(x, pool_len))
    assert jnp.allclose(out4, ref, atol=1e-5, rtol=1e-5), "mismatch vs reference (4)"

    print("KERNEL_OK")
</pallas_src>

<mosaic_0001>
module attributes {stable_mosaic.version = 11 : i64} {
  func.func @_gap_kernel(%arg0: i32, %arg1: i32, %arg2: i32, %arg3: memref<2x8x32xf32, #tpu.memory_space<vmem>>, %arg4: memref<2x32xf32, #tpu.memory_space<vmem>>, %arg5: memref<2x32xf32, #tpu.memory_space<vmem>>) attributes {dimension_semantics = [#tpu.dimension_semantics<parallel>, #tpu.dimension_semantics<parallel>, #tpu.dimension_semantics<arbitrary>], iteration_bounds = array<i64: 1, 1, 1>, scalar_prefetch = 0 : i64, scratch_operands = 1 : i64, tpu.core_type = #tpu.core_type<tc>, window_params = [{transform_indices = @transform_0, window_bounds = array<i64: 2, 8, 32>}, {transform_indices = @transform_1, window_bounds = array<i64: 2, 32>}]} {
    %c0_i32 = arith.constant 0 : i32
    %0 = arith.cmpi eq, %arg2, %c0_i32 : i32
    %1 = arith.extui %0 : i1 to i32
    %c0_i32_0 = arith.constant 0 : i32
    %2 = arith.cmpi ne, %1, %c0_i32_0 : i32
    scf.if %2 {
      %cst = arith.constant 0.000000e+00 : f32
      %12 = vector.broadcast %cst : f32 to vector<2x32xf32>
      %c0 = arith.constant 0 : index
      %c0_6 = arith.constant 0 : index
      %13 = vector.load %arg5[%c0, %c0_6] : memref<2x32xf32, #tpu.memory_space<vmem>>, vector<2x32xf32>
      tpu.vector_store %arg5[%c0, %c0_6], %12 {strides = array<i32>} : memref<2x32xf32, #tpu.memory_space<vmem>>, vector<2x32xf32>,
    } else {
    }
    %c0_i32_1 = arith.constant 0 : i32
    %3 = arith.cmpi eq, %arg2, %c0_i32_1 : i32
    %4 = arith.extui %3 : i1 to i32
    %c0_i32_2 = arith.constant 0 : i32
    %5 = arith.cmpi ne, %4, %c0_i32_2 : i32
    scf.if %5 {
      %c0_i32_6 = arith.constant 0 : i32
      %12 = arith.addi %c0_i32_6, %arg2 : i32
      %c8_i32 = arith.constant 8 : i32
      %13 = arith.muli %12, %c8_i32 : i32
      %14 = tpu.iota {dimensions = array<i32: 1>} : vector<1x8x1xi32>
      %15 = vector.broadcast %13 : i32 to vector<1x8x1xi32>
      %16 = arith.addi %15, %14 : vector<1x8x1xi32>
      %c2_i32 = arith.constant 2 : i32
      %17 = vector.broadcast %c2_i32 : i32 to vector<1x8x1xi32>
      %18 = arith.cmpi sge, %16, %17 : vector<1x8x1xi32>
      %c8_i32_7 = arith.constant 8 : i32
      %19 = vector.broadcast %c8_i32_7 : i32 to vector<1x8x1xi32>
      %20 = arith.cmpi slt, %16, %19 : vector<1x8x1xi32>
      %21 = arith.andi %18, %20 : vector<1x8x1xi1>
      %c0 = arith.constant 0 : index
      %c0_8 = arith.constant 0 : index
      %c0_9 = arith.constant 0 : index
      %22 = vector.load %arg3[%c0, %c0_8, %c0_9] : memref<2x8x32xf32, #tpu.memory_space<vmem>>, vector<2x8x32xf32>
      %c0_i32_10 = arith.constant 0 : i32
      %23 = arith.sitofp %c0_i32_10 : i32 to f32
      %24 = vector.shape_cast %21 : vector<1x8x1xi1> to vector<1x8x1xi1>
      %25 = vector.broadcast %24 : vector<1x8x1xi1> to vector<2x8x32xi1>
      %26 = vector.broadcast %23 : f32 to vector<2x8x32xf32>
      %27 = arith.select %25, %22, %26 : vector<2x8x32xi1>, vector<2x8x32xf32>
      %c0_11 = arith.constant 0 : index
      %c0_12 = arith.constant 0 : index
      %28 = vector.load %arg5[%c0_11, %c0_12] : memref<2x32xf32, #tpu.memory_space<vmem>>, vector<2x32xf32>
      %cst = arith.constant dense<0.000000e+00> : vector<2x32xf32>
      %29 = vector.multi_reduction <add>, %27, %cst [1] : vector<2x8x32xf32> to vector<2x32xf32>
      %30 = arith.addf %28, %29 : vector<2x32xf32>
      %c0_13 = arith.constant 0 : index
      %c0_14 = arith.constant 0 : index
      %31 = vector.load %arg5[%c0_13, %c0_14] : memref<2x32xf32, #tpu.memory_space<vmem>>, vector<2x32xf32>
      tpu.vector_store %arg5[%c0_13, %c0_14], %30 {strides = array<i32>} : memref<2x32xf32, #tpu.memory_space<vmem>>, vector<2x32xf32>,
    } else {
    }
    %true = arith.constant true
    %6 = arith.xori %3, %true : i1
    %7 = arith.extui %6 : i1 to i32
    %c0_i32_3 = arith.constant 0 : i32
    %8 = arith.cmpi ne, %7, %c0_i32_3 : i32
    scf.if %8 {
      %c0 = arith.constant 0 : index
      %c0_6 = arith.constant 0 : index
      %12 = vector.load %arg5[%c0, %c0_6] : memref<2x32xf32, #tpu.memory_space<vmem>>, vector<2x32xf32>
      %c0_7 = arith.constant 0 : index
      %c0_8 = arith.constant 0 : index
      %c0_9 = arith.constant 0 : index
      %13 = vector.load %arg3[%c0_7, %c0_8, %c0_9] : memref<2x8x32xf32, #tpu.memory_space<vmem>>, vector<2x8x32xf32>
      %cst = arith.constant dense<0.000000e+00> : vector<2x32xf32>
      %14 = vector.multi_reduction <add>, %13, %cst [1] : vector<2x8x32xf32> to vector<2x32xf32>
      %15 = arith.addf %12, %14 : vector<2x32xf32>
      %c0_10 = arith.constant 0 : index
      %c0_11 = arith.constant 0 : index
      %16 = vector.load %arg5[%c0_10, %c0_11] : memref<2x32xf32, #tpu.memory_space<vmem>>, vector<2x32xf32>
      tpu.vector_store %arg5[%c0_10, %c0_11], %15 {strides = array<i32>} : memref<2x32xf32, #tpu.memory_space<vmem>>, vector<2x32xf32>,
    } else {
    }
    %c0_i32_4 = arith.constant 0 : i32
    %9 = arith.cmpi eq, %arg2, %c0_i32_4 : i32
    %10 = arith.extui %9 : i1 to i32
    %c0_i32_5 = arith.constant 0 : i32
    %11 = arith.cmpi ne, %10, %c0_i32_5 : i32
    scf.if %11 {
      %c0 = arith.constant 0 : index
      %c0_6 = arith.constant 0 : index
      %12 = vector.load %arg5[%c0, %c0_6] : memref<2x32xf32, #tpu.memory_space<vmem>>, vector<2x32xf32>
      %cst = arith.constant 0.166666672 : f32
      %13 = vector.broadcast %cst : f32 to vector<2x32xf32>
      %14 = arith.mulf %12, %13 : vector<2x32xf32>
      %c0_7 = arith.constant 0 : index
      %c0_8 = arith.constant 0 : index
      %15 = vector.load %arg4[%c0_7, %c0_8] : memref<2x32xf32, #tpu.memory_space<vmem>>, vector<2x32xf32>
      tpu.vector_store %arg4[%c0_7, %c0_8], %14 {strides = array<i32>} : memref<2x32xf32, #tpu.memory_space<vmem>>, vector<2x32xf32>,
    } else {
    }
    return
  }
  func.func @transform_0(%arg0: i32, %arg1: i32, %arg2: i32) -> (i32, i32, i32) {
    %c0_i32 = arith.constant 0 : i32
    %0 = arith.addi %c0_i32, %arg2 : i32
    %c0_i32_0 = arith.constant 0 : i32
    return %arg0, %0, %arg1 : i32, i32, i32
  }
  func.func @transform_1(%arg0: i32, %arg1: i32, %arg2: i32) -> (i32, i32) {
    %c0_i32 = arith.constant 0 : i32
    return %arg0, %arg1 : i32, i32
  }
}

</mosaic_0001>

<llo_original>
// kernel: tpu_custom_call.1
$region0: #{tpu_custom_call.1}
  #allocation0 [shape = 'u32[]', space=smem, size = 0x4, offset = 0x4, fixed_abs, tag = 'smem constant byte address 0x4 - core index']
  #allocation1 [shape = 'u32[144,128]{1,0:T(1,128)}', space=vmem, size = 0x12000, scoped, tag = 'internal scratch']
  #allocation2 [shape = 'f32[2,32]{1,0:T(2,128)}', space=vmem, size = 0x400, scoped, tag = 'scratch operand']
  %s0 = inlined_call_operand.hbm [shape: f32[2,8,32], index: 0, kind: input, shape index: {}]
  %s1 = inlined_call_operand.hbm [shape: f32[2,32], index: 1, kind: output, shape index: {}]
  %s2 = sld [smem:[#allocation0]]
  $region30: #{tpu_custom_call.1} parent=0
    _
  %s4 = ssub.s32 1, %s2
  %s5 = scalar_select 0, %s4, %s2
  $region1: #{tpu_custom_call.1} parent=0
    #allocation3 [shape = 'u8[8192]{0}', space=vmem, size = 0x2000, scoped, tag = 'input window, operand 0, single buffered']
    #allocation4 [shape = 's32[1]{0}', space=sflag, size = 0x4, scoped, tag = 'scoped memory for tpu_custom_call.1']
    #allocation5 [shape = 's32[1]{0}', space=sflag, size = 0x4, scoped, tag = 'scoped memory for tpu_custom_call.1']
    #allocation6 [shape = 'u8[1024]{0}', space=vmem, size = 0x400, scoped, tag = 'output window, operand 0, single buffered']
    %6 = vsyncpa [#allocation4], 0
    %7 = vsyncpa [#allocation5], 0
    // Predicated region
    $region2: #{tpu_custom_call.1} parent=1 // pred_check
      _
    $region3: #{tpu_custom_call.1} parent=1 // pred_check_branch
      %9 = sbr.rel (0) target = $region5
    $region4: #{tpu_custom_call.1} parent=1 // pred_region
      %s11 = ssub.s32 256, 256
      %12 = vsyncadd [#allocation4], %s11
      %s13 = sshll.u32 [#allocation3], 4
      %s14 = int_to_ptr.vmem [resolvable:$true] %s13
      %19 = dma.hbm_to_vmem [thread:$0]  %s0, 256, %s14, [#allocation4], 128, 128, 8
    $region5: #{tpu_custom_call.1} parent=1 // pred_fallthru
      _
    // Predicated region
    $region6: #{tpu_custom_call.1} parent=1 // pred_check
      _
    $region7: #{tpu_custom_call.1} parent=1 // pred_check_branch
      %21 = sbr.rel (0) target = $region9
    $region8: #{tpu_custom_call.1} parent=1 // pred_region
      %22 = dma.done [#allocation4], 256
    $region9: #{tpu_custom_call.1} parent=1 // pred_fallthru
      _
    %p23 = scmp.eq.s32.totalorder 0, 0
    // Predicated region
    $region10: #{tpu_custom_call.1} parent=1 // pred_check
      %p24 = pneg %p23
    $region11: #{tpu_custom_call.1} parent=1 // pred_check_branch
      %26 = sbr.rel (%p24) target = $region13
    $region12: #{tpu_custom_call.1} parent=1 // pred_region
      %vm27 = vcmask 254976
      %28 = vst.msk [vmem:[#allocation2] sm:$0x3] %vm27, 0.0
      %s29 = smul.u32 0, 8
      %v30 = vlaneseq
      %v31 = vshrl.u32 %v30, 7
      %v32 = vstv %s29
      %v33 = vadd.s32 %v32, %v31
      %vm34 = vcmp.ge.s32.totalorder %v33, 2
      %vm35 = vcmp.lt.s32.totalorder %v33, 8
      %vm36 = vmand %vm34, %vm35
      %v37 = vld [vmem:[#allocation3] sm:$0xff]
      %v38 = vld [vmem:[#allocation3 + $0x8] sm:$0xff]
      %v39 = vsel %vm36, 1, 0
      %vm40 = vcmp.eq.s32.totalorder %v39, 1
      %v41 = vsel %vm40, %v37, 0.0
      %v42 = vsel %vm40, %v38, 0.0
      %v43 = vld [vmem:[#allocation2] sm:$0x3]
      %vm44 = vcmask 261120
      %v45 = vsel %vm44, %v41, 0.0
      %v46 = vrot.slane %v45, 4
      %v47 = vadd.f32 %v45, %v46
      %v48 = vrot.slane %v47, 2
      %v49 = vadd.f32 %v47, %v48
      %v50 = vrot.slane %v49, 1
      %v51 = vadd.f32 %v49, %v50
      %v52 = vsel %vm44, %v42, 0.0
      %v53 = vrot.slane %v52, 4
      %v54 = vadd.f32 %v52, %v53
      %v55 = vrot.slane %v54, 2
      %v56 = vadd.f32 %v54, %v55
      %v57 = vrot.slane %v56, 1
      %v58 = vadd.f32 %v56, %v57
      %vm61 = vcmask 1041409
      %v62 = vsel %vm61, %v58, %v51
      %v64 = vadd.f32 %v43, %v62
      %65 = vst.msk [vmem:[#allocation2] sm:$0x3] %vm27, %v64
    $region13: #{tpu_custom_call.1} parent=1 // pred_fallthru
      _
    %p66 = scmp.ne.s32.totalorder 0, 0
    // Predicated region
    $region14: #{tpu_custom_call.1} parent=1 // pred_check
      %p67 = pneg %p66
    $region15: #{tpu_custom_call.1} parent=1 // pred_check_branch
      %69 = sbr.rel (%p67) target = $region17
    $region16: #{tpu_custom_call.1} parent=1 // pred_region
      %v70 = vld [vmem:[#allocation2] sm:$0x3]
      %v71 = vld [vmem:[#allocation3] sm:$0xff]
      %v72 = vld [vmem:[#allocation3 + $0x8] sm:$0xff]
      %vm73 = vcmask 261120
      %v74 = vsel %vm73, %v71, 0.0
      %v75 = vrot.slane %v74, 4
      %v76 = vadd.f32 %v74, %v75
      %v77 = vrot.slane %v76, 2
      %v78 = vadd.f32 %v76, %v77
      %v79 = vrot.slane %v78, 1
      %v80 = vadd.f32 %v78, %v79
      %v81 = vsel %vm73, %v72, 0.0
      %v82 = vrot.slane %v81, 4
      %v83 = vadd.f32 %v81, %v82
      %v84 = vrot.slane %v83, 2
      %v85 = vadd.f32 %v83, %v84
      %v86 = vrot.slane %v85, 1
      %v87 = vadd.f32 %v85, %v86
      %vm90 = vcmask 1041409
      %v91 = vsel %vm90, %v87, %v80
      %v93 = vadd.f32 %v70, %v91
      %vm94 = vcmask 254976
      %95 = vst.msk [vmem:[#allocation2] sm:$0x3] %vm94, %v93
    $region17: #{tpu_custom_call.1} parent=1 // pred_fallthru
      _
    // Predicated region
    $region18: #{tpu_custom_call.1} parent=1 // pred_check
      %p96 = pneg %p23
    $region19: #{tpu_custom_call.1} parent=1 // pred_check_branch
      %98 = sbr.rel (%p96) target = $region21
    $region20: #{tpu_custom_call.1} parent=1 // pred_region
      %v99 = vld [vmem:[#allocation2] sm:$0x3]
      %v100 = vmul.f32 %v99, 0.16666667
      %vm101 = vcmask 254976
      %102 = vst.msk [vmem:[#allocation6] sm:$0x3] %vm101, %v100
    $region21: #{tpu_custom_call.1} parent=1 // pred_fallthru
      _
    // Predicated region
    $region22: #{tpu_custom_call.1} parent=1 // pred_check
      _
    $region23: #{tpu_custom_call.1} parent=1 // pred_check_branch
      %104 = sbr.rel (0) target = $region25
    $region24: #{tpu_custom_call.1} parent=1 // pred_region
      %s106 = ssub.s32 32, 32
      %107 = vsyncadd [#allocation5], %s106
      %s109 = sshll.u32 [#allocation6], 4
      %s110 = int_to_ptr.vmem [resolvable:$true] %s109
      %112 = dma.vmem_to_hbm [thread:$0]  %s110, 32, %s1, [#allocation5]
    $region25: #{tpu_custom_call.1} parent=1 // pred_fallthru
      _
    // Predicated region
    $region26: #{tpu_custom_call.1} parent=1 // pred_check
      _
    $region27: #{tpu_custom_call.1} parent=1 // pred_check_branch
      %114 = sbr.rel (0) target = $region29
    $region28: #{tpu_custom_call.1} parent=1 // pred_region
      %115 = dma.done [#allocation5], 32
    $region29: #{tpu_custom_call.1} parent=1 // pred_fallthru
      _
    %116 = vsyncpa [#allocation4], 1
    %117 = vsyncpa [#allocation5], 1

</llo_original>
